<compile_context>
chip_gen: v5e
topology: v5e:2x2
jax: 0.10.0
libtpu: 0.0.40
codegen_flags: <defaults>
</compile_context>

<pallas_src>
import math
import functools

import jax
import jax.numpy as jnp
from jax.experimental import pallas as pl
from jax.experimental.pallas import tpu as pltpu


_MiB = 1024 * 1024
# Keep the whole [in_dim, out_dim] weight VMEM-resident (single buffer) only
# while it fits comfortably inside the smallest per-core VMEM (v7x: 64 MiB
# physical); above this, use the (M, N, K)-tiled fallback.
_RESIDENT_WEIGHT_LIMIT = 20 * _MiB


def _round_up(x, m):
    return (x + m - 1) // m * m


def _sublane_align(dtype):
    # Min legal sublane tile: 8 for 4-byte dtypes, 16 for bf16, 32 for int8.
    return max(8, 32 // jnp.dtype(dtype).itemsize)


# ---------------------------------------------------------------------------
# Kernels
# ---------------------------------------------------------------------------
def _resident_kernel(x_ref, w_ref, b_ref, o_ref, *, scale, lr_mul):
    # x_ref: [tm, K]; w_ref: [K, N] (pre-transposed) -> MXU-native x @ W.
    acc = jnp.dot(x_ref[...], w_ref[...], preferred_element_type=jnp.float32)
    o_ref[...] = (acc * scale
                  + b_ref[...].astype(jnp.float32) * lr_mul).astype(o_ref.dtype)


def _ktiled_kernel(x_ref, w_ref, b_ref, o_ref, acc_ref, *, scale, lr_mul):
    k = pl.program_id(2)

    @pl.when(k == 0)
    def _():
        acc_ref[...] = jnp.zeros_like(acc_ref)

    acc_ref[...] += jnp.dot(x_ref[...], w_ref[...],
                            preferred_element_type=jnp.float32)

    @pl.when(k == pl.num_programs(2) - 1)
    def _():
        o_ref[...] = (acc_ref[...] * scale
                      + b_ref[...].astype(jnp.float32) * lr_mul
                      ).astype(o_ref.dtype)


# ---------------------------------------------------------------------------
# Wrapper
# ---------------------------------------------------------------------------
def equal_linear(x, weight, bias, *, lr_mul=1.0, block_m=512):
    """EqualLinear forward: x @ (weight*scale).T + bias*lr_mul.

    x: [B, in_dim]; weight: [out_dim, in_dim] (PyTorch layout); bias: [out_dim].
    (For peak MXU throughput on v6e/v7x, pass x/weight in bf16; accumulation
    and the scale/bias epilogue stay in f32 inside the kernel.)
    """
    B, in_dim = x.shape
    out_dim, in_dim_w = weight.shape
    assert in_dim == in_dim_w
    assert bias.shape == (out_dim,)
    scale = 1.0 / math.sqrt(in_dim) * lr_mul

    out_dtype = x.dtype
    itemsize = jnp.dtype(x.dtype).itemsize
    w_itemsize = jnp.dtype(weight.dtype).itemsize
    align = _sublane_align(x.dtype)

    # Pre-transpose once in XLA: MXU-native [K, N] RHS, no in-kernel relayout.
    w_t = weight.T                                        # [in_dim, out_dim]

    # Lane-dense output: pad N to a multiple of 128 (unmasked vst writeback).
    out_dim_p = _round_up(out_dim, 128)
    if out_dim_p != out_dim:
        w_t = jnp.pad(w_t, ((0, 0), (0, out_dim_p - out_dim)))
        bias_p = jnp.pad(bias, (0, out_dim_p - out_dim))
    else:
        bias_p = bias
    bias2d = bias_p.reshape(1, out_dim_p)

    # Batch tile: keep >= 2 grid steps when possible so the "parallel" M axis
    # can shard across v7x's two TensorCores; aligned to the dtype sublane min.
    if B <= block_m:
        tm = _round_up(pl.cdiv(B, 2), align) if B >= 2 * align else B
    else:
        tm = _round_up(block_m, align)
    grid_m = pl.cdiv(B, tm)

    flops = 2 * B * in_dim * out_dim
    bytes_accessed = (x.size * x.dtype.itemsize
                      + weight.size * weight.dtype.itemsize
                      + bias.size * bias.dtype.itemsize
                      + B * out_dim * itemsize)
    cost = pl.CostEstimate(flops=flops, bytes_accessed=bytes_accessed,
                           transcendentals=0)

    w_bytes = in_dim * out_dim_p * w_itemsize

    if w_bytes <= _RESIDENT_WEIGHT_LIMIT:
        # ---------------- resident-weight fast path ----------------
        kernel = functools.partial(_resident_kernel, scale=scale, lr_mul=lr_mul)

        # Single-buffered weight+bias, double-buffered x / out, ~30% headroom.
        need = (w_bytes
                + out_dim_p * jnp.dtype(bias2d.dtype).itemsize
                + 2 * tm * in_dim * itemsize
                + 2 * tm * out_dim_p * itemsize)
        vmem_limit = int(min(max(int(need * 1.3), 32 * _MiB), 64 * _MiB))

        out_p = pl.pallas_call(
            kernel,
            out_shape=jax.ShapeDtypeStruct((B, out_dim_p), out_dtype),
            grid_spec=pltpu.PrefetchScalarGridSpec(
                num_scalar_prefetch=0,
                grid=(grid_m,),
                in_specs=[
                    # x: streamed per M tile (double-buffered by Pallas).
                    pl.BlockSpec((tm, in_dim), lambda i: (i, 0)),
                    # weight / bias: constant block -> VMEM-resident, 1 buffer.
                    pl.BlockSpec((in_dim, out_dim_p), lambda i: (0, 0),
                                 pipeline_mode=pl.Buffered(1)),
                    pl.BlockSpec((1, out_dim_p), lambda i: (0, 0),
                                 pipeline_mode=pl.Buffered(1)),
                ],
                out_specs=pl.BlockSpec((tm, out_dim_p), lambda i: (i, 0)),
            ),
            compiler_params=pltpu.CompilerParams(
                dimension_semantics=("parallel",),
                vmem_limit_bytes=vmem_limit,
            ),
            cost_estimate=cost,
        )(x, w_t, bias2d)
    else:
        # ---------------- (M, N, K)-tiled fallback for large layers --------
        kernel = functools.partial(_ktiled_kernel, scale=scale, lr_mul=lr_mul)
        tk = 512
        tn = next(t for t in (512, 256, 128) if out_dim_p % t == 0)

        # Zero-pad K so ragged K blocks can never poison the accumulator.
        in_dim_p = _round_up(in_dim, tk)
        if in_dim_p != in_dim:
            x_p = jnp.pad(x, ((0, 0), (0, in_dim_p - in_dim)))
            w_t = jnp.pad(w_t, ((0, in_dim_p - in_dim), (0, 0)))
        else:
            x_p = x

        grid = (grid_m, out_dim_p // tn, in_dim_p // tk)

        need = (2 * tm * tk * itemsize                 # x tiles
                + 2 * tk * tn * w_itemsize             # weight tiles
                + 2 * tm * tn * itemsize               # out tiles
                + tm * tn * 4                          # f32 accumulator
                + 2 * tn * jnp.dtype(bias2d.dtype).itemsize)
        vmem_limit = int(min(max(int(need * 1.3), 32 * _MiB), 64 * _MiB))

        out_p = pl.pallas_call(
            kernel,
            out_shape=jax.ShapeDtypeStruct((B, out_dim_p), out_dtype),
            grid_spec=pltpu.PrefetchScalarGridSpec(
                num_scalar_prefetch=0,
                grid=grid,
                in_specs=[
                    pl.BlockSpec((tm, tk), lambda i, j, k: (i, k)),
                    pl.BlockSpec((tk, tn), lambda i, j, k: (k, j)),
                    pl.BlockSpec((1, tn), lambda i, j, k: (0, j)),
                ],
                out_specs=pl.BlockSpec((tm, tn), lambda i, j, k: (i, j)),
                scratch_shapes=[pltpu.VMEM((tm, tn), jnp.float32)],
            ),
            compiler_params=pltpu.CompilerParams(
                dimension_semantics=("parallel", "parallel", "arbitrary"),
                vmem_limit_bytes=vmem_limit,
            ),
            cost_estimate=cost,
        )(x_p, w_t, bias2d)

    if out_dim_p != out_dim:
        out_p = out_p[:, :out_dim]
    return out_p


if __name__ == "__main__":
    # Small shapes consistent with the module; B > tm so the M grid actually
    # tiles (grid of 2, one per v7x TensorCore) and out_dim < 128 so the
    # lane-padding path is exercised.
    B, in_dim, out_dim = 16, 32, 16
    lr_mul = 0.5
    bias_init = 1.0

    key = jax.random.PRNGKey(0)
    kx, kw = jax.random.split(key)

    # Deterministic parameter init mirroring __init__:
    #   weight = randn(out_dim, in_dim) / lr_mul ; bias = zeros(out_dim).fill_(bias_init)
    weight = jax.random.normal(kw, (out_dim, in_dim), dtype=jnp.float32) / lr_mul
    bias = jnp.full((out_dim,), bias_init, dtype=jnp.float32)
    x = jax.random.normal(kx, (B, in_dim), dtype=jnp.float32)

    out = equal_linear(x, weight, bias, lr_mul=lr_mul)
    out = jax.block_until_ready(out)

    # Pure-JAX reference check (the PyTorch forward).
    scale = 1.0 / math.sqrt(in_dim) * lr_mul
    ref = x @ (weight * scale).T + bias * lr_mul
    assert out.shape == (B, out_dim)
    assert jnp.allclose(out, ref, atol=1e-5, rtol=1e-5)

    print("KERNEL_OK")
</pallas_src>

<mosaic_0001>
module attributes {stable_mosaic.version = 11 : i64} {
  func.func @_resident_kernel(%arg0: i32, %arg1: memref<8x32xf32, #tpu.memory_space<vmem>>, %arg2: memref<32x128xf32, #tpu.memory_space<vmem>>, %arg3: memref<1x128xf32, #tpu.memory_space<vmem>>, %arg4: memref<8x128xf32, #tpu.memory_space<vmem>>) attributes {dimension_semantics = [#tpu.dimension_semantics<parallel>], iteration_bounds = array<i64: 2>, scalar_prefetch = 0 : i64, scratch_operands = 0 : i64, tpu.core_type = #tpu.core_type<tc>, window_params = [{transform_indices = @transform_0, window_bounds = array<i64: 8, 32>}, {pipeline_mode = #tpu.pipeline_mode<synchronous>, transform_indices = @transform_1, window_bounds = array<i64: 32, 128>}, {pipeline_mode = #tpu.pipeline_mode<synchronous>, transform_indices = @transform_2, window_bounds = array<i64: 1, 128>}, {transform_indices = @transform_3, window_bounds = array<i64: 8, 128>}]} {
    %c0 = arith.constant 0 : index
    %c0_0 = arith.constant 0 : index
    %0 = vector.load %arg1[%c0, %c0_0] : memref<8x32xf32, #tpu.memory_space<vmem>>, vector<8x32xf32>
    %c0_1 = arith.constant 0 : index
    %c0_2 = arith.constant 0 : index
    %1 = vector.load %arg2[%c0_1, %c0_2] : memref<32x128xf32, #tpu.memory_space<vmem>>, vector<32x128xf32>
    %cst = arith.constant dense<0.000000e+00> : vector<8x128xf32>
    %2 = tpu.matmul %0, %1, %cst {dimension_numbers = #tpu.dot_dimension_numbers<[1], [0], [0], [1], [0, 0, 1, 1], [], []>} : vector<8x32xf32>, vector<32x128xf32>, vector<8x128xf32> -> vector<8x128xf32>
    %cst_3 = arith.constant 0.0883883461 : f32
    %3 = vector.broadcast %cst_3 : f32 to vector<8x128xf32>
    %4 = arith.mulf %2, %3 : vector<8x128xf32>
    %c0_4 = arith.constant 0 : index
    %c0_5 = arith.constant 0 : index
    %5 = vector.load %arg3[%c0_4, %c0_5] : memref<1x128xf32, #tpu.memory_space<vmem>>, vector<1x128xf32>
    %cst_6 = arith.constant 5.000000e-01 : f32
    %6 = vector.broadcast %cst_6 : f32 to vector<1x128xf32>
    %7 = arith.mulf %5, %6 : vector<1x128xf32>
    %8 = vector.broadcast %7 : vector<1x128xf32> to vector<8x128xf32>
    %9 = arith.addf %4, %8 : vector<8x128xf32>
    %c0_7 = arith.constant 0 : index
    %c0_8 = arith.constant 0 : index
    %10 = vector.load %arg4[%c0_7, %c0_8] : memref<8x128xf32, #tpu.memory_space<vmem>>, vector<8x128xf32>
    tpu.vector_store %arg4[%c0_7, %c0_8], %9 {strides = array<i32>} : memref<8x128xf32, #tpu.memory_space<vmem>>, vector<8x128xf32>,
    return
  }
  func.func @transform_0(%arg0: i32) -> (i32, i32) {
    %c0_i32 = arith.constant 0 : i32
    %c0_i32_0 = arith.constant 0 : i32
    return %arg0, %c0_i32 : i32, i32
  }
  func.func @transform_1(%arg0: i32) -> (i32, i32) {
    %c0_i32 = arith.constant 0 : i32
    %c0_i32_0 = arith.constant 0 : i32
    %c0_i32_1 = arith.constant 0 : i32
    return %c0_i32, %c0_i32_0 : i32, i32
  }
  func.func @transform_2(%arg0: i32) -> (i32, i32) {
    %c0_i32 = arith.constant 0 : i32
    %c0_i32_0 = arith.constant 0 : i32
    %c0_i32_1 = arith.constant 0 : i32
    return %c0_i32, %c0_i32_0 : i32, i32
  }
  func.func @transform_3(%arg0: i32) -> (i32, i32) {
    %c0_i32 = arith.constant 0 : i32
    %c0_i32_0 = arith.constant 0 : i32
    return %arg0, %c0_i32 : i32, i32
  }
}

</mosaic_0001>

<llo_original>
// kernel: tpu_custom_call.1
$region0: #{tpu_custom_call.1}
  #allocation0 [shape = 'u32[]', space=smem, size = 0x4, offset = 0x4, fixed_abs, tag = 'smem constant byte address 0x4 - core index']
  #allocation1 [shape = 'u32[72,128]{1,0:T(1,128)}', space=vmem, size = 0x9000, scoped, tag = 'internal scratch']
  %s0 = inlined_call_operand.hbm [shape: f32[16,32], index: 0, kind: input, shape index: {}]
  %s1 = inlined_call_operand.hbm [shape: f32[32,128], index: 1, kind: input, shape index: {}]
  %s2 = inlined_call_operand.vmem [shape: f32[1,128], index: 2, kind: input, shape index: {}]
  %s3 = inlined_call_operand.hbm [shape: f32[16,128], index: 3, kind: output, shape index: {}]
  %s4 = sld [smem:[#allocation0]]
  $region53: #{tpu_custom_call.1} parent=0
    _
  %s6 = ssub.s32 1, %s4
  %s7 = scalar_select 0, %s6, %s4
  $region1: #{tpu_custom_call.1} parent=0
    #allocation2 [shape = 'u8[8192]{0}', space=vmem, size = 0x2000, scoped, tag = 'input window, operand 0']
    #allocation3 [shape = 's32[2]{0}', space=sflag, size = 0x8, scoped, tag = 'scoped memory for tpu_custom_call.1']
    #allocation4 [shape = 's32[2]{0}', space=sflag, size = 0x8, scoped, tag = 'scoped memory for tpu_custom_call.1']
    #allocation5 [shape = 'u8[16384]{0}', space=vmem, size = 0x4000, scoped, tag = 'input window, operand 1, single buffered']
    #allocation6 [shape = 's32[1]{0}', space=sflag, size = 0x4, scoped, tag = 'scoped memory for tpu_custom_call.1']
    #allocation7 [shape = 'u8[8192]{0}', space=vmem, size = 0x2000, scoped, tag = 'output window, operand 0']
    %8 = vsyncpa [#allocation3], 0
    %s9 = scalar_lea.sflag [#allocation3], 1
    %10 = vsyncpa %s9, 0
    %11 = vsyncpa [#allocation6], 0
    %12 = vsyncpa [#allocation4], 0
    %s13 = scalar_lea.sflag [#allocation4], 1
    %14 = vsyncpa %s13, 0
    loop: start=0, step=1, limit=4
    $region2: #{tpu_custom_call.1} parent=1 // loop_pre_header
      _
    $region3: #{tpu_custom_call.1} parent=1 // loop_header
      %s16 = sphi 0, %s20
      %p17 = scmp.ge.s32.totalorder %s16, 4
      %s26 = sphi 0, %s28
      %s29 = sphi 0, %s26
      %s30 = sphi 0, %s29
      %s46 = sphi 0, %s30
      %s50 = sphi 0, %s50
      %s52 = sphi 0, %s50
      %s53 = sphi 0, %s52
      %s67 = sphi 0, %s53
      %s71 = sphi 0, %s71
      %s73 = sphi 0, %s71
      %s74 = sphi 0, %s73
      %s88 = sphi 0, %s74
      %s94 = sphi 0, %s96
      %s97 = sphi 0, %s94
      %s98 = sphi 0, %s97
      %s114 = sphi 0, %s98
    $region4: #{tpu_custom_call.1} parent=1 // loop_header_branch
      %19 = sbr.rel (%p17) target = $region8
    $region5: #{tpu_custom_call.1} parent=1 // loop_body
      %s21 = ssub.s32 %s16, 1
      %s22 = ssub.s32 %s16, 2
      %s23 = sadd.s32 %s16, 1
      %s24 = ssub.s32 %s16, %s23
      %p25 = scmp.eq.s32.totalorder %s24, 0
      %s27 = sadd.s32 %s26, 1
      %s28 = scalar_select %p25, %s26, %s27
      %p31 = pneg %p25
      %p32 = scmp.eq.s32.totalorder %s16, 1
      %p33 = por %p31, %p32
      %p34 = scmp.ne.s32.totalorder %s26, %s29
      %p35 = scmp.eq.s32.totalorder %s16, 0
      %p36 = por %p34, %p35
      %p37 = scmp.ne.s32.totalorder %s26, %s29
      %p38 = scmp.eq.s32.totalorder %s21, 1
      %p39 = por %p37, %p38
      %p40 = scmp.ne.s32.totalorder %s29, %s30
      %p41 = scmp.eq.s32.totalorder %s21, 0
      %p42 = por %p40, %p41
      %p43 = scmp.ne.s32.totalorder %s29, %s30
      %p44 = scmp.eq.s32.totalorder %s22, 1
      %p45 = por %p43, %p44
      %p47 = scmp.ne.s32.totalorder %s30, %s46
      %p48 = scmp.eq.s32.totalorder %s22, 0
      %p49 = por %p47, %p48
      %s51 = sadd.s32 %s50, 1
      %p54 = scmp.eq.s32.totalorder %s16, 1
      %p55 = scmp.ne.s32.totalorder %s50, %s52
      %p56 = scmp.eq.s32.totalorder %s16, 0
      %p57 = por %p55, %p56
      %p58 = scmp.ne.s32.totalorder %s50, %s52
      %p59 = scmp.eq.s32.totalorder %s21, 1
      %p60 = por %p58, %p59
      %p61 = scmp.ne.s32.totalorder %s52, %s53
      %p62 = scmp.eq.s32.totalorder %s21, 0
      %p63 = por %p61, %p62
      %p64 = scmp.ne.s32.totalorder %s52, %s53
      %p65 = scmp.eq.s32.totalorder %s22, 1
      %p66 = por %p64, %p65
      %p68 = scmp.ne.s32.totalorder %s53, %s67
      %p69 = scmp.eq.s32.totalorder %s22, 0
      %p70 = por %p68, %p69
      %s72 = sadd.s32 %s71, 1
      %p75 = scmp.eq.s32.totalorder %s16, 1
      %p76 = scmp.ne.s32.totalorder %s71, %s73
      %p77 = scmp.eq.s32.totalorder %s16, 0
      %p78 = por %p76, %p77
      %p79 = scmp.ne.s32.totalorder %s71, %s73
      %p80 = scmp.eq.s32.totalorder %s21, 1
      %p81 = por %p79, %p80
      %p82 = scmp.ne.s32.totalorder %s73, %s74
      %p83 = scmp.eq.s32.totalorder %s21, 0
      %p84 = por %p82, %p83
      %p85 = scmp.ne.s32.totalorder %s73, %s74
      %p86 = scmp.eq.s32.totalorder %s22, 1
      %p87 = por %p85, %p86
      %p89 = scmp.ne.s32.totalorder %s74, %s88
      %p90 = scmp.eq.s32.totalorder %s22, 0
      %p91 = por %p89, %p90
      %s92 = ssub.s32 %s16, %s23
      %p93 = scmp.eq.s32.totalorder %s92, 0
      %s95 = sadd.s32 %s94, 1
      %s96 = scalar_select %p93, %s94, %s95
      %p99 = pneg %p93
      %p100 = scmp.eq.s32.totalorder %s16, 1
      %p101 = por %p99, %p100
      %p102 = scmp.ne.s32.totalorder %s94, %s97
      %p103 = scmp.eq.s32.totalorder %s16, 0
      %p104 = por %p102, %p103
      %p105 = scmp.ne.s32.totalorder %s94, %s97
      %p106 = scmp.eq.s32.totalorder %s21, 1
      %p107 = por %p105, %p106
      %p108 = scmp.ne.s32.totalorder %s97, %s98
      %p109 = scmp.eq.s32.totalorder %s21, 0
      %p110 = por %p108, %p109
      %p111 = scmp.ne.s32.totalorder %s97, %s98
      %p112 = scmp.eq.s32.totalorder %s22, 1
      %p113 = por %p111, %p112
      %p115 = scmp.ne.s32.totalorder %s98, %s114
      %p116 = scmp.eq.s32.totalorder %s22, 0
      %p117 = por %p115, %p116
      %p118 = scmp.le.s32.totalorder 1, %s16
      %p119 = scmp.lt.s32.totalorder %s16, 3
      %p120 = pnand %p118, %p119
      %p121 = pneg %p120
      // Predicated region
      $region9: #{tpu_custom_call.1} parent=5 // pred_check
        _
      $region10: #{tpu_custom_call.1} parent=5 // pred_check_branch
        %123 = sbr.rel (%p120) target = $region12
      $region11: #{tpu_custom_call.1} parent=5 // pred_region
        %s124 = ssub.s32 %s16, 1
        // Predicated region
        $region13: #{tpu_custom_call.1} parent=11 // pred_check
          %p125 = pneg %p63
        $region14: #{tpu_custom_call.1} parent=11 // pred_check_branch
          %127 = sbr.rel (%p125) target = $region16
        $region15: #{tpu_custom_call.1} parent=11 // pred_region
          %129 = vsyncadd [#allocation6], 0
          %s130 = sshll.u32 %s1, 4
          %s131 = int_to_ptr.hbm [resolvable:$true] %s130
          %s132 = sshll.u32 [#allocation5], 4
          %s133 = int_to_ptr.vmem [resolvable:$true] %s132
          %138 = dma.hbm_to_vmem [thread:$0]  %s131, 512, %s133, [#allocation6], 128, 128, 8
        $region16: #{tpu_custom_call.1} parent=11 // pred_fallthru
          _
        // Predicated region
        $region17: #{tpu_custom_call.1} parent=11 // pred_check
          %p139 = pneg %p84
        $region18: #{tpu_custom_call.1} parent=11 // pred_check_branch
          %141 = sbr.rel (%p139) target = $region20
        $region19: #{tpu_custom_call.1} parent=11 // pred_region
          _
        $region20: #{tpu_custom_call.1} parent=11 // pred_fallthru
          _
      $region12: #{tpu_custom_call.1} parent=5 // pred_fallthru
        _
      %p142 = scmp.lt.s32.totalorder %s16, 2
      // Predicated region
      $region21: #{tpu_custom_call.1} parent=5 // pred_check
        %p143 = pneg %p142
      $region22: #{tpu_custom_call.1} parent=5 // pred_check_branch
        %145 = sbr.rel (%p143) target = $region24
      $region23: #{tpu_custom_call.1} parent=5 // pred_region
        // Predicated region
        $region25: #{tpu_custom_call.1} parent=23 // pred_check
          %p146 = pneg %p36
        $region26: #{tpu_custom_call.1} parent=23 // pred_check_branch
          %148 = sbr.rel (%p146) target = $region28
        $region27: #{tpu_custom_call.1} parent=23 // pred_region
          %s149 = sand.u32 %s26, 1
          %s150 = scalar_lea.sflag [#allocation3], %s149
          %s151 = sand.u32 %s26, 1
          %s152 = smul.addr %s151, 8
          %s153 = scalar_lea.vmem [#allocation2], %s152
          %155 = vsyncadd %s150, 0
          %s156 = smul.addr %s16, 8
          %s157 = scalar_lea.hbm %s0, %s156
          %s159 = sshll.u32 %s157, 4
          %s160 = int_to_ptr.hbm [resolvable:$true] %s159
          %s161 = sshll.u32 %s153, 4
          %s162 = int_to_ptr.vmem [resolvable:$true] %s161
          %164 = dma.hbm_to_vmem [thread:$0]  %s160, 128, %s162, %s150
        $region28: #{tpu_custom_call.1} parent=23 // pred_fallthru
          _
      $region24: #{tpu_custom_call.1} parent=5 // pred_fallthru
        _
      %p165 = scmp.le.s32.totalorder 1, %s16
      %p166 = scmp.lt.s32.totalorder %s16, 3
      %p167 = pnand %p165, %p166
      %p168 = pneg %p167
      // Predicated region
      $region29: #{tpu_custom_call.1} parent=5 // pred_check
        _
      $region30: #{tpu_custom_call.1} parent=5 // pred_check_branch
        %170 = sbr.rel (%p167) target = $region32
      $region31: #{tpu_custom_call.1} parent=5 // pred_region
        %s171 = ssub.s32 %s16, 1
        %s172 = sand.u32 %s29, 1
        %s173 = scalar_lea.sflag [#allocation3], %s172
        %s174 = sand.u32 %s29, 1
        %s175 = smul.addr %s174, 8
        %s176 = scalar_lea.vmem [#allocation2], %s175
        // Predicated region
        $region33: #{tpu_custom_call.1} parent=31 // pred_check
          %p177 = pneg %p42
        $region34: #{tpu_custom_call.1} parent=31 // pred_check_branch
          %179 = sbr.rel (%p177) target = $region36
        $region35: #{tpu_custom_call.1} parent=31 // pred_region
          %181 = dma.done %s173, 128
        $region36: #{tpu_custom_call.1} parent=31 // pred_fallthru
          _
        // Predicated region
        $region37: #{tpu_custom_call.1} parent=31 // pred_check
          %p182 = pneg %p63
        $region38: #{tpu_custom_call.1} parent=31 // pred_check_branch
          %184 = sbr.rel (%p182) target = $region40
        $region39: #{tpu_custom_call.1} parent=31 // pred_region
          %186 = dma.done [#allocation6], 512
        $region40: #{tpu_custom_call.1} parent=31 // pred_fallthru
          _
        %s187 = sand.u32 %s29, 1
        %s188 = scalar_lea.sflag [#allocation3], %s187
        %s189 = sand.u32 %s29, 1
        %s190 = smul.addr %s189, 8
        %s191 = scalar_lea.vmem [#allocation2], %s190
        %p192 = pneg %p42
        %p193 = pneg %p39
        %p194 = pneg %p63
        %p195 = pneg %p60
        %p196 = pneg %p84
        %p197 = pneg %p81
        %p198 = pneg %p110
        %p199 = pneg %p107
        %s200 = sand.u32 %s97, 1
        %s201 = scalar_lea.sflag [#allocation4], %s200
        %s202 = sand.u32 %s97, 1
        %s203 = smul.addr %s202, 8
        %s204 = scalar_lea.vmem [#allocation7], %s203
        %v205 = vld [vmem:[%s176] sm:$0xff]
        %v206 = vld [vmem:[#allocation5] sm:$0xff]
        %v207 = vld [vmem:[#allocation5 + $0x8] sm:$0xff]
        %v208 = vld [vmem:[#allocation5 + $0x10] sm:$0xff]
        %v209 = vld [vmem:[#allocation5 + $0x18] sm:$0xff]
        %vm210 = vcmask 261120
        %v212 = vsel %vm210, %v205, 0
        %214 = vmatpush.msra.mxu0 0.0
        %215 = vmatpush.msra.mxu0 0.0
        %216 = vmatpush.msra.mxu0 0.0
        %217 = vmatpush.msra.mxu0 0.0
        %218 = vmatpush.msra.mxu0 0.0
        %219 = vmatpush.msra.mxu0 0.0
        %220 = vmatpush.msra.mxu0 0.0
        %221 = vmatpush.msra.mxu0 0.0
        %222 = vmatpush.msra.mxu0 0.0
        %223 = vmatpush.msra.mxu0 0.0
        %224 = vmatpush.msra.mxu0 0.0
        %225 = vmatpush.msra.mxu0 0.0
        %226 = vmatpush.msra.mxu0 %v209
        %227 = vmatpush.msra.mxu0 %v208
        %228 = vmatpush.msra.mxu0 %v207
        %229 = vmatpush.msra.mxu0 %v206
        %230 = vmatmul.f32.gmra.mxu0 %v212
        %v231 = vpop.f32.mrf.mxu0
        %v232 = vadd.f32 0.0, %v231
        %233 = vdwg.mxu0
        %v234 = vmul.f32 %v232, 0.088388346
        %v235 = vld [vmem:[%s2] sm:$0x1]
        %v236 = vmul.f32 %v235, 0.5
        %v238 = vperm.slane %v236, 0
        %v240 = vadd.f32 %v234, %v238
        %241 = vst [vmem:[%s204] sm:$0xff] %v240
        %s242 = sand.u32 %s97, 1
        %s243 = scalar_lea.sflag [#allocation4], %s242
        %s244 = sand.u32 %s97, 1
        %s245 = smul.addr %s244, 8
        %s246 = scalar_lea.vmem [#allocation7], %s245
        // Predicated region
        $region41: #{tpu_custom_call.1} parent=31 // pred_check
          %p247 = pneg %p107
        $region42: #{tpu_custom_call.1} parent=31 // pred_check_branch
          %249 = sbr.rel (%p247) target = $region44
        $region43: #{tpu_custom_call.1} parent=31 // pred_region
          %251 = vsyncadd %s243, 0
          %s252 = smul.addr %s21, 8
          %s253 = scalar_lea.hbm %s3, %s252
          %s255 = sshll.u32 %s246, 4
          %s256 = int_to_ptr.vmem [resolvable:$true] %s255
          %s257 = sshll.u32 %s253, 4
          %s258 = int_to_ptr.hbm [resolvable:$true] %s257
          %260 = dma.vmem_to_hbm [thread:$0]  %s256, 128, %s258, %s243
        $region44: #{tpu_custom_call.1} parent=31 // pred_fallthru
          _
      $region32: #{tpu_custom_call.1} parent=5 // pred_fallthru
        _
      %p261 = scmp.le.s32.totalorder 2, %s16
      // Predicated region
      $region45: #{tpu_custom_call.1} parent=5 // pred_check
        %p262 = pneg %p261
      $region46: #{tpu_custom_call.1} parent=5 // pred_check_branch
        %264 = sbr.rel (%p262) target = $region48
      $region47: #{tpu_custom_call.1} parent=5 // pred_region
        %s265 = ssub.s32 %s16, 2
        // Predicated region
        $region49: #{tpu_custom_call.1} parent=47 // pred_check
          %p266 = pneg %p113
        $region50: #{tpu_custom_call.1} parent=47 // pred_check_branch
          %268 = sbr.rel (%p266) target = $region52
        $region51: #{tpu_custom_call.1} parent=47 // pred_region
          %s269 = sand.u32 %s98, 1
          %s270 = scalar_lea.sflag [#allocation4], %s269
          %s271 = sand.u32 %s98, 1
          %s272 = smul.addr %s271, 8
          %s273 = scalar_lea.vmem [#allocation7], %s272
          %275 = dma.done %s270, 128
        $region52: #{tpu_custom_call.1} parent=47 // pred_fallthru
          _
      $region48: #{tpu_custom_call.1} parent=5 // pred_fallthru
        _
    $region6: #{tpu_custom_call.1} parent=1 // loop_footer
      %s20 = sadd.s32 1, %s16
    $region7: #{tpu_custom_call.1} parent=1 // loop_footer_branch
      %15 = sbr.rel target = $region3
    $region8: #{tpu_custom_call.1} parent=1 // loop_exit
      _
    %276 = vsyncpa [#allocation3], 1
    %s277 = scalar_lea.sflag [#allocation3], 1
    %278 = vsyncpa %s277, 1
    %279 = vsyncpa [#allocation6], 1
    %280 = vsyncpa [#allocation4], 1
    %s281 = scalar_lea.sflag [#allocation4], 1
    %282 = vsyncpa %s281, 1

</llo_original>
